<compile_context>
chip_gen: v6e
topology: v6e:2x2x1
jax: 0.10.0
libtpu: 0.0.40
codegen_flags: <defaults>
</compile_context>

<pallas_src>
import functools

import jax
import jax.numpy as jnp
from jax.experimental import pallas as pl
from jax.experimental.pallas import tpu as pltpu


def _triplet_kernel(a_ref, p_ref, n_ref, out_ref, acc_ref, *, margin,
                    lane_groups):
    # Grid: (B tiles [parallel], D tiles [arbitrary reduction]).
    k = pl.program_id(1)

    @pl.when(k == 0)
    def _():
        acc_ref[...] = jnp.zeros_like(acc_ref)

    # Keep subtract/multiply in the input dtype (bf16 stays bf16 on the VPU);
    # only the per-step partial result is promoted to f32 for accumulation.
    in_dtype = a_ref.dtype
    compute_dtype = in_dtype if jnp.issubdtype(in_dtype, jnp.floating) \
        else jnp.float32
    a = a_ref[...].astype(compute_dtype)
    dp = a - p_ref[...].astype(compute_dtype)
    dn = a - n_ref[...].astype(compute_dtype)
    sq = (dp * dp - dn * dn).astype(jnp.float32)   # (tile_b, tile_d)

    if lane_groups > 0:
        # Lane-dense path: fold the tile_d lanes into 128-wide groups with
        # pure element-wise VPU adds; accumulator stays (tile_b, 128).
        partial = sq[:, 0:128]
        for g in range(1, lane_groups):
            partial = partial + sq[:, g * 128:(g + 1) * 128]
        acc_ref[...] += partial
    else:
        # tile_d not a multiple of 128: cross-lane reduce each step into a
        # (tile_b, 1) accumulator (old behaviour).
        acc_ref[...] += jnp.sum(sq, axis=1, keepdims=True)

    @pl.when(k == pl.num_programs(1) - 1)
    def _():
        # Single cross-lane reduce (identity when acc is already (tile_b, 1)),
        # then the hinge.  Batch sum over rows happens in the wrapper.
        row = jnp.sum(acc_ref[...], axis=1, keepdims=True)       # (tile_b, 1)
        out_ref[...] = jnp.maximum(row + jnp.float32(margin), 0.0)


def _pick_tile(total, align, cap):
    """Largest legal tile along one axis: either the full extent `total`
    (always a legal block extent), or a divisor of `total` that is a multiple
    of `align`, capped at `cap` elements."""
    if total <= cap:
        return total
    best = 0
    t = align
    while t <= cap:
        if total % t == 0:
            best = t
        t += align
    return best if best > 0 else total


def _vmem_capacity_bytes():
    """Best-effort query of on-chip VMEM capacity; conservative fallback."""
    try:
        info = pltpu.get_tpu_info()
        cap = getattr(info, "vmem_capacity_bytes", None)
        if cap is not None and cap > 0:
            return int(cap)
    except Exception:
        pass
    return 64 << 20   # conservative (v7x-sized) default


def triplet_loss(anchor, positive, negative, *, margin=1.0,
                 block_bytes_per_input=None):
    """Pallas TripletLoss.forward. Inputs: (B, D). Returns a scalar f32."""
    B, D = anchor.shape
    assert positive.shape == (B, D) and negative.shape == (B, D)

    itemsize = anchor.dtype.itemsize
    # Sub-32-bit dtypes pack along sublanes: align B tiles accordingly.
    sublane = max(8, 32 // itemsize)        # f32 -> 8, bf16 -> 16, int8 -> 32

    # ---- generation-aware VMEM budget --------------------------------------
    vmem_cap = _vmem_capacity_bytes()
    if block_bytes_per_input is None:
        if vmem_cap >= (96 << 20):          # v5e/v6e: 128 MiB VMEM
            block_bytes_per_input = 8 << 20
        else:                               # v7x: 64 MiB VMEM
            block_bytes_per_input = 5 << 20

    budget_elems = max(block_bytes_per_input // itemsize, 8 * 128)

    min_b = min(B, sublane)
    tile_d = _pick_tile(D, 128, max(budget_elems // min_b, 128))
    tile_b = _pick_tile(B, sublane, max(budget_elems // tile_d, sublane))

    # Guarantee >=2 blocks on the parallel B axis when B permits it, so both
    # TensorCores on multi-core parts (v7x) get work. Extra grid step is
    # ~0.35 us — negligible on single-core parts.
    if B // tile_b < 2:
        smaller = _pick_tile(B, sublane, max(B // 2, sublane))
        if smaller < tile_b:
            tile_b = smaller

    grid = (B // tile_b, D // tile_d)

    # Lane-dense accumulator when the D tile is a whole number of lane groups.
    lane_groups = (tile_d // 128) if (tile_d % 128 == 0) else 0
    acc_cols = 128 if lane_groups > 0 else 1

    # ---- derived VMEM limit -------------------------------------------------
    block_bytes = tile_b * tile_d * itemsize
    vmem_used = (3 * 2 * block_bytes          # 3 inputs, double-buffered
                 + tile_b * acc_cols * 4      # accumulator scratch
                 + 2 * tile_b * 1 * 4)        # (tile_b, 1) output, dbl-buffered
    vmem_limit = int(vmem_used * 1.25) + (4 << 20)           # 25% + 4 MiB slack
    limit_cap = (100 << 20) if vmem_cap >= (96 << 20) else (48 << 20)
    vmem_limit = max(16 << 20, min(vmem_limit, limit_cap))

    emb_spec = pl.BlockSpec((tile_b, tile_d), lambda bi, ki: (bi, ki))
    out_spec = pl.BlockSpec((tile_b, 1), lambda bi, ki: (bi, 0))

    cost = pl.CostEstimate(
        flops=int(7 * B * D),                              # subs/muls/adds
        transcendentals=0,
        bytes_accessed=int(3 * B * D * itemsize + B * 4),  # HBM-bound hint
    )

    per_row = pl.pallas_call(
        functools.partial(_triplet_kernel, margin=margin,
                          lane_groups=lane_groups),
        out_shape=jax.ShapeDtypeStruct((B, 1), jnp.float32),
        grid_spec=pltpu.PrefetchScalarGridSpec(
            num_scalar_prefetch=0,
            grid=grid,
            in_specs=[emb_spec, emb_spec, emb_spec],
            out_specs=out_spec,
            scratch_shapes=[
                pltpu.VMEM((tile_b, acc_cols), jnp.float32),
            ],
        ),
        compiler_params=pltpu.CompilerParams(
            # B tiles are independent (shardable across TensorCores);
            # D tiles are a sequential reduction.
            dimension_semantics=("parallel", "arbitrary"),
            vmem_limit_bytes=vmem_limit,
        ),
        cost_estimate=cost,
    )(anchor, positive, negative)

    # Final batch sum of the per-example hinge losses (tiny, done in XLA).
    return jnp.sum(per_row)


if __name__ == "__main__":
    key = jax.random.PRNGKey(0)
    ka, kp, kn = jax.random.split(key, 3)

    B, D = 8, 256  # small batch of embeddings
    anchor = jax.random.normal(ka, (B, D), dtype=jnp.float32)
    positive = jax.random.normal(kp, (B, D), dtype=jnp.float32)
    negative = jax.random.normal(kn, (B, D), dtype=jnp.float32)

    loss = triplet_loss(anchor, positive, negative, margin=1.0)
    loss = jax.block_until_ready(loss)

    # Reference (pure JAX) check of the PyTorch forward semantics.
    ap = jnp.sum((anchor - positive) ** 2, axis=1)
    an = jnp.sum((anchor - negative) ** 2, axis=1)
    ref = jnp.sum(jax.nn.relu(ap - an + 1.0))
    assert jnp.allclose(loss, ref, rtol=1e-5, atol=1e-5), (loss, ref)

    print("KERNEL_OK")
</pallas_src>

<mosaic_0001>
module attributes {stable_mosaic.version = 11 : i64} {
  func.func @_triplet_kernel(%arg0: i32, %arg1: i32, %arg2: memref<8x256xf32, #tpu.memory_space<vmem>>, %arg3: memref<8x256xf32, #tpu.memory_space<vmem>>, %arg4: memref<8x256xf32, #tpu.memory_space<vmem>>, %arg5: memref<8x1xf32, #tpu.memory_space<vmem>>, %arg6: memref<8x128xf32, #tpu.memory_space<vmem>>) attributes {dimension_semantics = [#tpu.dimension_semantics<parallel>, #tpu.dimension_semantics<arbitrary>], iteration_bounds = array<i64: 1, 1>, scalar_prefetch = 0 : i64, scratch_operands = 1 : i64, tpu.core_type = #tpu.core_type<tc>, window_params = [{transform_indices = @transform_0, window_bounds = array<i64: 8, 256>}, {transform_indices = @transform_1, window_bounds = array<i64: 8, 256>}, {transform_indices = @transform_2, window_bounds = array<i64: 8, 256>}, {transform_indices = @transform_3, window_bounds = array<i64: 8, 1>}]} {
    %c0_i32 = arith.constant 0 : i32
    %0 = arith.cmpi eq, %arg1, %c0_i32 : i32
    %1 = arith.extui %0 : i1 to i32
    %c0_i32_0 = arith.constant 0 : i32
    %2 = arith.cmpi ne, %1, %c0_i32_0 : i32
    scf.if %2 {
      %cst = arith.constant 0.000000e+00 : f32
      %20 = vector.broadcast %cst : f32 to vector<8x128xf32>
      %c0_12 = arith.constant 0 : index
      %c0_13 = arith.constant 0 : index
      %21 = vector.load %arg6[%c0_12, %c0_13] : memref<8x128xf32, #tpu.memory_space<vmem>>, vector<8x128xf32>
      tpu.vector_store %arg6[%c0_12, %c0_13], %20 {strides = array<i32>} : memref<8x128xf32, #tpu.memory_space<vmem>>, vector<8x128xf32>,
    } else {
    }
    %c0 = arith.constant 0 : index
    %c0_1 = arith.constant 0 : index
    %3 = vector.load %arg2[%c0, %c0_1] : memref<8x256xf32, #tpu.memory_space<vmem>>, vector<8x256xf32>
    %c0_2 = arith.constant 0 : index
    %c0_3 = arith.constant 0 : index
    %4 = vector.load %arg3[%c0_2, %c0_3] : memref<8x256xf32, #tpu.memory_space<vmem>>, vector<8x256xf32>
    %5 = arith.subf %3, %4 : vector<8x256xf32>
    %c0_4 = arith.constant 0 : index
    %c0_5 = arith.constant 0 : index
    %6 = vector.load %arg4[%c0_4, %c0_5] : memref<8x256xf32, #tpu.memory_space<vmem>>, vector<8x256xf32>
    %7 = arith.subf %3, %6 : vector<8x256xf32>
    %8 = arith.mulf %5, %5 : vector<8x256xf32>
    %9 = arith.mulf %7, %7 : vector<8x256xf32>
    %10 = arith.subf %8, %9 : vector<8x256xf32>
    %11 = vector.extract_strided_slice %10 {offsets = [0, 0], sizes = [8, 128], strides = [1, 1]} : vector<8x256xf32> to vector<8x128xf32>
    %12 = vector.extract_strided_slice %10 {offsets = [0, 128], sizes = [8, 128], strides = [1, 1]} : vector<8x256xf32> to vector<8x128xf32>
    %13 = arith.addf %11, %12 : vector<8x128xf32>
    %c0_6 = arith.constant 0 : index
    %c0_7 = arith.constant 0 : index
    %14 = vector.load %arg6[%c0_6, %c0_7] : memref<8x128xf32, #tpu.memory_space<vmem>>, vector<8x128xf32>
    %15 = arith.addf %14, %13 : vector<8x128xf32>
    %c0_8 = arith.constant 0 : index
    %c0_9 = arith.constant 0 : index
    %16 = vector.load %arg6[%c0_8, %c0_9] : memref<8x128xf32, #tpu.memory_space<vmem>>, vector<8x128xf32>
    tpu.vector_store %arg6[%c0_8, %c0_9], %15 {strides = array<i32>} : memref<8x128xf32, #tpu.memory_space<vmem>>, vector<8x128xf32>,
    %c0_i32_10 = arith.constant 0 : i32
    %17 = arith.cmpi eq, %arg1, %c0_i32_10 : i32
    %18 = arith.extui %17 : i1 to i32
    %c0_i32_11 = arith.constant 0 : i32
    %19 = arith.cmpi ne, %18, %c0_i32_11 : i32
    scf.if %19 {
      %c0_12 = arith.constant 0 : index
      %c0_13 = arith.constant 0 : index
      %20 = vector.load %arg6[%c0_12, %c0_13] : memref<8x128xf32, #tpu.memory_space<vmem>>, vector<8x128xf32>
      %cst = arith.constant dense<0.000000e+00> : vector<8xf32>
      %21 = vector.multi_reduction <add>, %20, %cst [1] : vector<8x128xf32> to vector<8xf32>
      %22 = vector.shape_cast %21 : vector<8xf32> to vector<8x1xf32>
      %cst_14 = arith.constant 1.000000e+00 : f32
      %23 = vector.broadcast %cst_14 : f32 to vector<8x1xf32>
      %24 = arith.addf %22, %23 : vector<8x1xf32>
      %cst_15 = arith.constant 0.000000e+00 : f32
      %25 = vector.broadcast %cst_15 : f32 to vector<8x1xf32>
      %26 = arith.maximumf %24, %25 : vector<8x1xf32>
      %c0_16 = arith.constant 0 : index
      %c0_17 = arith.constant 0 : index
      %27 = vector.load %arg5[%c0_16, %c0_17] : memref<8x1xf32, #tpu.memory_space<vmem>>, vector<8x1xf32>
      tpu.vector_store %arg5[%c0_16, %c0_17], %26 {strides = array<i32>} : memref<8x1xf32, #tpu.memory_space<vmem>>, vector<8x1xf32>,
    } else {
    }
    return
  }
  func.func @transform_0(%arg0: i32, %arg1: i32) -> (i32, i32) {
    %c0_i32 = arith.constant 0 : i32
    return %arg0, %arg1 : i32, i32
  }
  func.func @transform_1(%arg0: i32, %arg1: i32) -> (i32, i32) {
    %c0_i32 = arith.constant 0 : i32
    return %arg0, %arg1 : i32, i32
  }
  func.func @transform_2(%arg0: i32, %arg1: i32) -> (i32, i32) {
    %c0_i32 = arith.constant 0 : i32
    return %arg0, %arg1 : i32, i32
  }
  func.func @transform_3(%arg0: i32, %arg1: i32) -> (i32, i32) {
    %c0_i32 = arith.constant 0 : i32
    %c0_i32_0 = arith.constant 0 : i32
    return %arg0, %c0_i32 : i32, i32
  }
}

</mosaic_0001>

<llo_original>
// kernel: tpu_custom_call.1
$region0: #{tpu_custom_call.1}
  #allocation0 [shape = 'u32[]', space=smem, size = 0x4, offset = 0x4, fixed_abs, tag = 'smem constant byte address 0x4 - core index']
  #allocation1 [shape = 'u32[144,128]{1,0:T(1,128)}', space=vmem, size = 0x12000, scoped, tag = 'internal scratch']
  #allocation2 [shape = 'f32[8,128]{1,0:T(8,128)}', space=vmem, size = 0x1000, scoped, tag = 'scratch operand']
  %s0 = inlined_call_operand.hbm [shape: f32[8,256], index: 0, kind: input, shape index: {}]
  %s1 = inlined_call_operand.hbm [shape: f32[8,256], index: 1, kind: input, shape index: {}]
  %s2 = inlined_call_operand.hbm [shape: f32[8,256], index: 2, kind: input, shape index: {}]
  %s3 = inlined_call_operand.vmem [shape: f32[8,1], index: 3, kind: output, shape index: {}]
  %s4 = sld [smem:[#allocation0]]
  $region42: #{tpu_custom_call.1} parent=0
    _
  %s6 = ssub.s32 1, %s4
  %s7 = scalar_select 0, %s6, %s4
  $region1: #{tpu_custom_call.1} parent=0
    #allocation3 [shape = 'u8[8192]{0}', space=vmem, size = 0x2000, scoped, tag = 'input window, operand 0, single buffered']
    #allocation4 [shape = 's32[1]{0}', space=sflag, size = 0x4, scoped, tag = 'scoped memory for tpu_custom_call.1']
    #allocation5 [shape = 'u8[8192]{0}', space=vmem, size = 0x2000, scoped, tag = 'input window, operand 1, single buffered']
    #allocation6 [shape = 's32[1]{0}', space=sflag, size = 0x4, scoped, tag = 'scoped memory for tpu_custom_call.1']
    #allocation7 [shape = 'u8[8192]{0}', space=vmem, size = 0x2000, scoped, tag = 'input window, operand 2, single buffered']
    %8 = vsyncpa [#allocation4], 0
    %9 = vsyncpa [#allocation6], 0
    // Predicated region
    $region2: #{tpu_custom_call.1} parent=1 // pred_check
      _
    $region3: #{tpu_custom_call.1} parent=1 // pred_check_branch
      %11 = sbr.rel (0) target = $region5
    $region4: #{tpu_custom_call.1} parent=1 // pred_region
      %s13 = ssub.s32 256, 256
      %14 = vsyncadd [#allocation4], %s13
      %s16 = sshll.u32 [#allocation3], 4
      %s17 = int_to_ptr.vmem [resolvable:$true] %s16
      %19 = dma.hbm_to_vmem [thread:$0]  %s0, 256, %s17, [#allocation4]
    $region5: #{tpu_custom_call.1} parent=1 // pred_fallthru
      _
    // Predicated region
    $region6: #{tpu_custom_call.1} parent=1 // pred_check
      _
    $region7: #{tpu_custom_call.1} parent=1 // pred_check_branch
      %21 = sbr.rel (0) target = $region9
    $region8: #{tpu_custom_call.1} parent=1 // pred_region
      %s23 = ssub.s32 256, 256
      %24 = vsyncadd [#allocation6], %s23
      %s26 = sshll.u32 [#allocation5], 4
      %s27 = int_to_ptr.vmem [resolvable:$true] %s26
      %29 = dma.hbm_to_vmem [thread:$0]  %s1, 256, %s27, [#allocation6]
    $region9: #{tpu_custom_call.1} parent=1 // pred_fallthru
      _
    // Predicated region
    $region10: #{tpu_custom_call.1} parent=1 // pred_check
      _
    $region11: #{tpu_custom_call.1} parent=1 // pred_check_branch
      %31 = sbr.rel (0) target = $region13
    $region12: #{tpu_custom_call.1} parent=1 // pred_region
      %s33 = ssub.s32 256, 256
      %34 = vsyncadd [#allocation6], %s33
      %s36 = sshll.u32 [#allocation7], 4
      %s37 = int_to_ptr.vmem [resolvable:$true] %s36
      %39 = dma.hbm_to_vmem [thread:$0]  %s2, 256, %s37, [#allocation6]
    $region13: #{tpu_custom_call.1} parent=1 // pred_fallthru
      _
    // Predicated region
    $region14: #{tpu_custom_call.1} parent=1 // pred_check
      _
    $region15: #{tpu_custom_call.1} parent=1 // pred_check_branch
      %41 = sbr.rel (0) target = $region17
    $region16: #{tpu_custom_call.1} parent=1 // pred_region
      %42 = dma.done [#allocation4], 256
    $region17: #{tpu_custom_call.1} parent=1 // pred_fallthru
      _
    // Predicated region
    $region18: #{tpu_custom_call.1} parent=1 // pred_check
      _
    $region19: #{tpu_custom_call.1} parent=1 // pred_check_branch
      %44 = sbr.rel (0) target = $region21
    $region20: #{tpu_custom_call.1} parent=1 // pred_region
      %45 = dma.done [#allocation6], 256
    $region21: #{tpu_custom_call.1} parent=1 // pred_fallthru
      _
    // Predicated region
    $region22: #{tpu_custom_call.1} parent=1 // pred_check
      _
    $region23: #{tpu_custom_call.1} parent=1 // pred_check_branch
      %47 = sbr.rel (0) target = $region25
    $region24: #{tpu_custom_call.1} parent=1 // pred_region
      %48 = dma.done [#allocation6], 256
    $region25: #{tpu_custom_call.1} parent=1 // pred_fallthru
      _
    %p49 = scmp.eq.s32.totalorder 0, 0
    // Predicated region
    $region26: #{tpu_custom_call.1} parent=1 // pred_check
      %p50 = pneg %p49
    $region27: #{tpu_custom_call.1} parent=1 // pred_check_branch
      %52 = sbr.rel (%p50) target = $region29
    $region28: #{tpu_custom_call.1} parent=1 // pred_region
      %53 = vst [vmem:[#allocation2] sm:$0xff] 0.0
    $region29: #{tpu_custom_call.1} parent=1 // pred_fallthru
      _
    %v54 = vld [vmem:[#allocation3] sm:$0xff]
    %v55 = vld [vmem:[#allocation3 + $0x8] sm:$0xff]
    %v56 = vld [vmem:[#allocation5] sm:$0xff]
    %v57 = vld [vmem:[#allocation5 + $0x8] sm:$0xff]
    %v58 = vsub.f32 %v54, %v56
    %v59 = vsub.f32 %v55, %v57
    %v60 = vld [vmem:[#allocation7] sm:$0xff]
    %v61 = vld [vmem:[#allocation7 + $0x8] sm:$0xff]
    %v62 = vsub.f32 %v54, %v60
    %v63 = vsub.f32 %v55, %v61
    %v64 = vmul.f32 %v58, %v58
    %v65 = vmul.f32 %v59, %v59
    %v66 = vmul.f32 %v62, %v62
    %v67 = vmul.f32 %v63, %v63
    %v68 = vsub.f32 %v64, %v66
    %v69 = vsub.f32 %v65, %v67
    %v70 = vadd.f32 %v68, %v69
    %v71 = vld [vmem:[#allocation2] sm:$0xff]
    %v72 = vadd.f32 %v71, %v70
    %73 = vst [vmem:[#allocation2] sm:$0xff] %v72
    // Predicated region
    $region30: #{tpu_custom_call.1} parent=1 // pred_check
      %p74 = pneg %p49
    $region31: #{tpu_custom_call.1} parent=1 // pred_check_branch
      %76 = sbr.rel (%p74) target = $region33
    $region32: #{tpu_custom_call.1} parent=1 // pred_region
      %v77 = vld [vmem:[#allocation2] sm:$0xff]
      %78 = vadd.xlane.f32.xlu0 %v77
      %v79 = vpop.xlane.xlu0 %78
      %v80 = vadd.f32 %v79, 1.0
      %v81 = vmax.f32 %v80, 0.0
      %vm82 = vcmask 7168
      %83 = vst.msk [vmem:[%s3] sm:$0xff] %vm82, %v81
    $region33: #{tpu_custom_call.1} parent=1 // pred_fallthru
      _
    // Predicated region
    $region34: #{tpu_custom_call.1} parent=1 // pred_check
      _
    $region35: #{tpu_custom_call.1} parent=1 // pred_check_branch
      %85 = sbr.rel (0) target = $region37
    $region36: #{tpu_custom_call.1} parent=1 // pred_region
      _
    $region37: #{tpu_custom_call.1} parent=1 // pred_fallthru
      _
    // Predicated region
    $region38: #{tpu_custom_call.1} parent=1 // pred_check
      _
    $region39: #{tpu_custom_call.1} parent=1 // pred_check_branch
      %87 = sbr.rel (0) target = $region41
    $region40: #{tpu_custom_call.1} parent=1 // pred_region
      _
    $region41: #{tpu_custom_call.1} parent=1 // pred_fallthru
      _
    %88 = vsyncpa [#allocation4], 1
    %89 = vsyncpa [#allocation6], 1

</llo_original>
